<compile_context>
chip_gen: v6e
topology: v6e:2x2x1
jax: 0.10.0
libtpu: 0.0.40
codegen_flags: <defaults>
</compile_context>

<pallas_src>
import jax
import jax.numpy as jnp
from jax.experimental import pallas as pl
from jax.experimental.pallas import tpu as pltpu


# ---------------------------------------------------------------------------
# Kernel
# ---------------------------------------------------------------------------

def _bn_relu_kernel(x_ref, scale_ref, shift_ref, o_ref):
    # x_ref/o_ref: [TR, TCOL]   rows = (n, c) pairs, cols = flattened H*W
    # scale_ref/shift_ref: [TR, 1] (or [R, 1] when resident) per-row affine,
    # broadcast across the lane-dense spatial axis.
    x = x_ref[...].astype(jnp.float32)
    scale = scale_ref[:x.shape[0], :]
    shift = shift_ref[:x.shape[0], :]
    y = jnp.maximum(x * scale + shift, 0.0)
    o_ref[...] = y.astype(o_ref.dtype)


# ---------------------------------------------------------------------------
# Tile / VMEM budgeting helpers
# ---------------------------------------------------------------------------

_MIB = 1024 * 1024


def _vmem_capacity_bytes():
    """Physical per-core VMEM; conservative fallback if query unavailable."""
    try:
        return int(pltpu.get_tpu_info().vmem_capacity_bytes)
    except Exception:
        return 64 * _MIB  # v7x per-TC size: safe lower bound for all chips


def _round_down(x, m):
    return max((x // m) * m, m)


def _choose_tiles(R, HW, itemsize, block_bytes_cap):
    """Pick (TR, TCOL) so one block <= block_bytes_cap, lane-dense last dim."""
    block_elems = max(block_bytes_cap // itemsize, 8 * 128)

    # Column (lane) axis: prefer the full H*W row (at most one <=127-lane
    # masked tail) over a 128-multiple tile that leaves a ragged column tile.
    col_cap = max(block_elems // 8, 128)
    if HW <= col_cap:
        tcol = HW
    else:
        tcol = _round_down(col_cap, 128)

    # Row (sublane) axis: fill the remaining budget, multiple of 8 (or full R).
    row_cap = max(block_elems // tcol, 8)
    if R <= row_cap:
        tr = R
    else:
        tr = _round_down(row_cap, 8)
    return tr, tcol


# ---------------------------------------------------------------------------
# Wrapper
# ---------------------------------------------------------------------------

def batchnorm_relu(x_nchw, gamma, beta, running_mean, running_var, eps=1e-5,
                   out_dtype=None):
    """Eval-mode BatchNorm2d + ReLU.  NCHW in / NCHW out (PyTorch layout)."""
    N, C, H, W = x_nchw.shape
    R, HW = N * C, H * W
    out_dtype = x_nchw.dtype if out_dtype is None else out_dtype

    # Fold running stats into a per-channel affine, then expand per row
    # (row = n*C + c, so the channel pattern tiles over the batch).
    scale = (gamma / jnp.sqrt(running_var + eps)).astype(jnp.float32)
    shift = (beta.astype(jnp.float32) - running_mean.astype(jnp.float32) * scale)
    scale_rows = jnp.tile(scale, N).reshape(R, 1)
    shift_rows = jnp.tile(shift, N).reshape(R, 1)

    # Free reshape: NCHW is contiguous as (N*C, H*W); spatial dim -> lanes.
    xf = x_nchw.reshape(R, HW)

    # --- VMEM budget -------------------------------------------------------
    vmem_cap = _vmem_capacity_bytes()                # 128 MiB v5e/v6e, 64 MiB v7x
    vmem_limit = min(vmem_cap * 3 // 4, 96 * _MIB)   # explicit scoped limit
    # Per-step footprint ~= 2*(x block) + 2*(out block) + tiny scale/shift.
    block_bytes_cap = min(vmem_limit // 5, 16 * _MIB)
    itemsize = max(jnp.dtype(x_nchw.dtype).itemsize,
                   jnp.dtype(out_dtype).itemsize)
    TR, TCOL = _choose_tiles(R, HW, itemsize, block_bytes_cap)

    n_row = pl.cdiv(R, TR)
    n_col = pl.cdiv(HW, TCOL)

    # --- Megacore: ensure the leading "parallel" axis has >= 2 blocks -------
    cols_lead = False
    if n_row == 1 and n_col >= 2:
        if R >= 16:
            # Shrink the row tile so work splits across both TensorCores.
            TR = ((R + 1) // 2 + 7) // 8 * 8
            n_row = pl.cdiv(R, TR)
        else:
            # Too few rows to split: promote columns to the leading axis and
            # keep scale/shift resident (full-R blocks) so they are not
            # re-fetched every inner step.
            cols_lead = True

    compiler_params = pltpu.CompilerParams(
        dimension_semantics=("parallel", "parallel"),
        vmem_limit_bytes=vmem_limit,
    )

    # Alias x's HBM buffer for the output when dtypes match (elementwise op).
    io_aliases = {0: 0} if out_dtype == x_nchw.dtype else {}

    if not cols_lead:
        grid = (n_row, n_col)   # columns innermost: scale/shift fetched once
        in_specs = [
            pl.BlockSpec((TR, TCOL), lambda i, j: (i, j)),
            pl.BlockSpec((TR, 1), lambda i, j: (i, 0)),
            pl.BlockSpec((TR, 1), lambda i, j: (i, 0)),
        ]
        out_spec = pl.BlockSpec((TR, TCOL), lambda i, j: (i, j))
    else:
        grid = (n_col, n_row)   # columns lead -> shard across cores
        in_specs = [
            pl.BlockSpec((TR, TCOL), lambda j, i: (i, j)),
            pl.BlockSpec((R, 1), lambda j, i: (0, 0)),   # resident
            pl.BlockSpec((R, 1), lambda j, i: (0, 0)),   # resident
        ]
        out_spec = pl.BlockSpec((TR, TCOL), lambda j, i: (i, j))

    out = pl.pallas_call(
        _bn_relu_kernel,
        out_shape=jax.ShapeDtypeStruct((R, HW), out_dtype),
        grid=grid,
        in_specs=in_specs,
        out_specs=out_spec,
        compiler_params=compiler_params,
        input_output_aliases=io_aliases,
    )(xf, scale_rows, shift_rows)

    return out.reshape(N, C, H, W)


# ---------------------------------------------------------------------------
# Pure-JAX reference (for correctness check)
# ---------------------------------------------------------------------------

def batchnorm_relu_ref(x, g, b, m, v, eps=1e-5):
    xn = (x - m[None, :, None, None]) / jnp.sqrt(v[None, :, None, None] + eps)
    return jnp.maximum(xn * g[None, :, None, None] + b[None, :, None, None], 0.0)


# ---------------------------------------------------------------------------
# Main
# ---------------------------------------------------------------------------

if __name__ == "__main__":
    N, C, H, W = 2, 4, 16, 16

    key = jax.random.PRNGKey(0)
    kx, kg, kb, km, kv = jax.random.split(key, 5)
    x = jax.random.normal(kx, (N, C, H, W), jnp.float32)
    gamma = jax.random.normal(kg, (C,), jnp.float32) * 0.1 + 1.0
    beta = jax.random.normal(kb, (C,), jnp.float32) * 0.1
    running_mean = jax.random.normal(km, (C,), jnp.float32) * 0.1
    running_var = jax.random.uniform(kv, (C,), jnp.float32,
                                     minval=0.5, maxval=1.5)

    fwd = jax.jit(batchnorm_relu)
    out = jax.block_until_ready(fwd(x, gamma, beta, running_mean, running_var))

    ref = batchnorm_relu_ref(x, gamma, beta, running_mean, running_var)
    assert out.shape == ref.shape == (N, C, H, W)
    max_err = float(jnp.max(jnp.abs(out - ref)))
    assert jnp.allclose(out, ref, atol=1e-5, rtol=1e-5), max_err

    print("KERNEL_OK")
</pallas_src>

<mosaic_0001>
module attributes {stable_mosaic.version = 11 : i64} {
  func.func @_bn_relu_kernel(%arg0: i32, %arg1: i32, %arg2: memref<8x256xf32, #tpu.memory_space<vmem>>, %arg3: memref<8x1xf32, #tpu.memory_space<vmem>>, %arg4: memref<8x1xf32, #tpu.memory_space<vmem>>, %arg5: memref<8x256xf32, #tpu.memory_space<vmem>>) attributes {dimension_semantics = [#tpu.dimension_semantics<parallel>, #tpu.dimension_semantics<parallel>], iteration_bounds = array<i64: 1, 1>, scalar_prefetch = 0 : i64, scratch_operands = 0 : i64, tpu.core_type = #tpu.core_type<tc>, window_params = [{transform_indices = @transform_0, window_bounds = array<i64: 8, 256>}, {transform_indices = @transform_1, window_bounds = array<i64: 8, 1>}, {transform_indices = @transform_2, window_bounds = array<i64: 8, 1>}, {transform_indices = @transform_3, window_bounds = array<i64: 8, 256>}]} {
    %c0 = arith.constant 0 : index
    %c0_0 = arith.constant 0 : index
    %0 = vector.load %arg2[%c0, %c0_0] : memref<8x256xf32, #tpu.memory_space<vmem>>, vector<8x256xf32>
    %c0_1 = arith.constant 0 : index
    %c0_2 = arith.constant 0 : index
    %1 = vector.load %arg3[%c0_1, %c0_2] : memref<8x1xf32, #tpu.memory_space<vmem>>, vector<8x1xf32>
    %c0_3 = arith.constant 0 : index
    %c0_4 = arith.constant 0 : index
    %2 = vector.load %arg4[%c0_3, %c0_4] : memref<8x1xf32, #tpu.memory_space<vmem>>, vector<8x1xf32>
    %3 = vector.broadcast %1 : vector<8x1xf32> to vector<8x256xf32>
    %4 = arith.mulf %0, %3 : vector<8x256xf32>
    %5 = vector.broadcast %2 : vector<8x1xf32> to vector<8x256xf32>
    %6 = arith.addf %4, %5 : vector<8x256xf32>
    %cst = arith.constant 0.000000e+00 : f32
    %7 = vector.broadcast %cst : f32 to vector<8x256xf32>
    %8 = arith.maximumf %6, %7 : vector<8x256xf32>
    %c0_5 = arith.constant 0 : index
    %c0_6 = arith.constant 0 : index
    %9 = vector.load %arg5[%c0_5, %c0_6] : memref<8x256xf32, #tpu.memory_space<vmem>>, vector<8x256xf32>
    tpu.vector_store %arg5[%c0_5, %c0_6], %8 {strides = array<i32>} : memref<8x256xf32, #tpu.memory_space<vmem>>, vector<8x256xf32>,
    return
  }
  func.func @transform_0(%arg0: i32, %arg1: i32) -> (i32, i32) {
    %c0_i32 = arith.constant 0 : i32
    return %arg0, %arg1 : i32, i32
  }
  func.func @transform_1(%arg0: i32, %arg1: i32) -> (i32, i32) {
    %c0_i32 = arith.constant 0 : i32
    %c0_i32_0 = arith.constant 0 : i32
    return %arg0, %c0_i32 : i32, i32
  }
  func.func @transform_2(%arg0: i32, %arg1: i32) -> (i32, i32) {
    %c0_i32 = arith.constant 0 : i32
    %c0_i32_0 = arith.constant 0 : i32
    return %arg0, %c0_i32 : i32, i32
  }
  func.func @transform_3(%arg0: i32, %arg1: i32) -> (i32, i32) {
    %c0_i32 = arith.constant 0 : i32
    return %arg0, %arg1 : i32, i32
  }
}

</mosaic_0001>

<llo_original>
// kernel: tile.0
$region0: #{tile.0}
  %s0 = inlined_call_operand.vmem [shape: f32[2,4], index: 0, kind: input, shape index: {}]
  %s1 = inlined_call_operand.vmem [shape: f32[8,1], index: 1, kind: output, shape index: {}]
  $region1: #{tile.0} parent=0
    #allocation0 [shape = 'u8[4096]{0}', space=vmem, size = 0x1000, scoped, tag = 'scoped mem for input reshape']
    %s3 = sshll.u32 1, 2
    %s4 = ssub.s32 %s3, 1
    %v5 = vld [vmem:[%s0] sm:%s4]
    %6 = vst [vmem:[#allocation0] sm:%s4] %v5
    %v7 = vld [vmem:[#allocation0] sm:$0x3]
    %vm8 = vcmask 7168
    %9 = vst.msk [vmem:[%s1] ss:$4 sm:$0x3] %vm8, %v7
    %v10 = vld [vmem:[#allocation0] sm:$0x3]
    %11 = vrot.lane.b32.xlu0 %v10, 127
    %v12 = vpop.permute.xlu0 %11
    %vm13 = vcmask 7168
    %s14 = scalar_lea.vmem %s1, 1
    %15 = vst.msk [vmem:[%s14] ss:$4 sm:$0x3] %vm13, %v12
    %v16 = vld [vmem:[#allocation0] sm:$0x3]
    %17 = vrot.lane.b32.xlu0 %v16, 126
    %v18 = vpop.permute.xlu0 %17
    %vm19 = vcmask 7168
    %s20 = scalar_lea.vmem %s1, 2
    %21 = vst.msk [vmem:[%s20] ss:$4 sm:$0x3] %vm19, %v18
    %v22 = vld [vmem:[#allocation0] sm:$0x3]
    %23 = vrot.lane.b32.xlu0 %v22, 125
    %v24 = vpop.permute.xlu0 %23
    %vm25 = vcmask 7168
    %s26 = scalar_lea.vmem %s1, 3
    %27 = vst.msk [vmem:[%s26] ss:$4 sm:$0x3] %vm25, %v24

// kernel: tile.18
$region0: #{tile.18}
  #allocation0 [shape = 's32[1]{0}', space=sflag, size = 0x4, scoped, tag = 'scoped memory for tile.18']
  %s0 = inlined_call_operand.vmem [shape: f32[4], index: 0, kind: input, shape index: {}]
  %s1 = inlined_call_operand.vmem [shape: f32[2,4], index: 1, kind: output, shape index: {}]
  // Predicated region
  $region2: #{tile.18} parent=0 // pred_check
    _
  $region3: #{tile.18} parent=0 // pred_check_branch
    %3 = sbr.rel (0) target = $region5
  $region4: #{tile.18} parent=0 // pred_region
    _
  $region5: #{tile.18} parent=0 // pred_fallthru
    _
  %v4 = vld [vmem:[%s0] ss:$0 sm:$0xff]
  %5 = vst [vmem:[%s1] sm:$0x3] %v4

// kernel: batchnorm_relu.1
$region0: #{batchnorm_relu.1}
  #allocation0 [shape = 'u32[]', space=smem, size = 0x4, offset = 0x4, fixed_abs, tag = 'smem constant byte address 0x4 - core index']
  #allocation1 [shape = 'u32[144,128]{1,0:T(1,128)}', space=vmem, size = 0x12000, scoped, tag = 'internal scratch']
  %s0 = inlined_call_operand.vmem [shape: f32[8,256], index: 0, kind: input, shape index: {}, may-alias: {0,3}]
  %s1 = inlined_call_operand.vmem [shape: f32[8,1], index: 1, kind: input, shape index: {}]
  %s2 = inlined_call_operand.vmem [shape: f32[8,1], index: 2, kind: input, shape index: {}]
  %s3 = inlined_call_operand.vmem [shape: f32[8,256], index: 3, kind: output, shape index: {}, may-alias: {0,3}]
  %s4 = sld [smem:[#allocation0]]
  $region22: #{batchnorm_relu.1} parent=0
    _
  %s6 = ssub.s32 1, %s4
  %s7 = scalar_select 0, %s6, %s4
  // Predicated region
  $region2: #{batchnorm_relu.1} parent=0 // pred_check
    _
  $region3: #{batchnorm_relu.1} parent=0 // pred_check_branch
    %9 = sbr.rel (0) target = $region5
  $region4: #{batchnorm_relu.1} parent=0 // pred_region
    _
  $region5: #{batchnorm_relu.1} parent=0 // pred_fallthru
    _
  // Predicated region
  $region6: #{batchnorm_relu.1} parent=0 // pred_check
    _
  $region7: #{batchnorm_relu.1} parent=0 // pred_check_branch
    %11 = sbr.rel (0) target = $region9
  $region8: #{batchnorm_relu.1} parent=0 // pred_region
    _
  $region9: #{batchnorm_relu.1} parent=0 // pred_fallthru
    _
  // Predicated region
  $region10: #{batchnorm_relu.1} parent=0 // pred_check
    _
  $region11: #{batchnorm_relu.1} parent=0 // pred_check_branch
    %13 = sbr.rel (0) target = $region13
  $region12: #{batchnorm_relu.1} parent=0 // pred_region
    _
  $region13: #{batchnorm_relu.1} parent=0 // pred_fallthru
    _
  %v14 = vld [vmem:[%s0] sm:$0xff]
  %v15 = vld [vmem:[%s0 + $0x8] sm:$0xff]
  %v16 = vld [vmem:[%s1] sm:$0xff]
  %v17 = vld [vmem:[%s2] sm:$0xff]
  %19 = vset.pattern.permute.xlu0 0
  %20 = vperm.xlu0 %19, %v16
  %v21 = vpop.permute.xlu0 %20
  %v23 = vmul.f32 %v14, %v21
  %v24 = vmul.f32 %v15, %v21
  %26 = vset.pattern.permute.xlu0 0
  %27 = vperm.xlu0 %26, %v17
  %v28 = vpop.permute.xlu0 %27
  %v30 = vadd.f32 %v23, %v28
  %v31 = vadd.f32 %v24, %v28
  %v32 = vmax.f32 %v30, 0.0
  %v33 = vmax.f32 %v31, 0.0
  %34 = vst [vmem:[%s3] sm:$0xff] %v32
  %35 = vst [vmem:[%s3 + $0x8] sm:$0xff] %v33
  // Predicated region
  $region14: #{batchnorm_relu.1} parent=0 // pred_check
    _
  $region15: #{batchnorm_relu.1} parent=0 // pred_check_branch
    %37 = sbr.rel (0) target = $region17
  $region16: #{batchnorm_relu.1} parent=0 // pred_region
    _
  $region17: #{batchnorm_relu.1} parent=0 // pred_fallthru
    _
  // Predicated region
  $region18: #{batchnorm_relu.1} parent=0 // pred_check
    _
  $region19: #{batchnorm_relu.1} parent=0 // pred_check_branch
    %39 = sbr.rel (0) target = $region21
  $region20: #{batchnorm_relu.1} parent=0 // pred_region
    _
  $region21: #{batchnorm_relu.1} parent=0 // pred_fallthru
    _

</llo_original>
